<compile_context>
chip_gen: v7x
topology: tpu7x:2x2x1
jax: 0.10.0
libtpu: 0.0.40
codegen_flags: <defaults>
</compile_context>

<pallas_src>
import functools

import jax
import jax.numpy as jnp
from jax import lax
from jax.experimental import pallas as pl
from jax.experimental.pallas import tpu as pltpu


def _round_up(n, m):
    return (n + m - 1) // m * m


def _embed_kernel(*refs, has_dropout, keep_threshold, inv_keep):
    # grid = (token_tiles, vocab_tiles); vocab axis is the reduction (last, arbitrary)
    if has_dropout:
        ids_ref, table_ref, bits_ref, out_ref, acc_ref = refs
    else:
        ids_ref, table_ref, out_ref, acc_ref = refs
        bits_ref = None

    k = pl.program_id(1)
    tt = out_ref.shape[0]
    tk = table_ref.shape[0]

    @pl.when(k == 0)
    def _():
        acc_ref[...] = jnp.zeros_like(acc_ref)

    # Embedding gather expressed as one-hot @ table-tile on the MXU.
    ids = ids_ref[...]                                             # (tt, 1) int32
    col = lax.broadcasted_iota(jnp.int32, (tt, tk), 1) + k * tk    # (tt, tk)
    one_hot = (ids == col).astype(table_ref.dtype)                 # (tt, tk)
    acc_ref[...] += jnp.dot(one_hot, table_ref[...],
                            preferred_element_type=jnp.float32)

    @pl.when(k == pl.num_programs(1) - 1)
    def _():
        emb = acc_ref[...]
        if has_dropout:
            # Integer-threshold dropout: keep iff bits >= p * 2^32, then one
            # fused select+scale multiply (no uint->float conversion).
            keep = bits_ref[...] >= jnp.uint32(keep_threshold)
            emb = emb * jnp.where(keep, jnp.float32(inv_keep), jnp.float32(0.0))
        out_ref[...] = emb.astype(out_ref.dtype)


def embedding_layer_forward(x, table, *, dropout_perc=0.1, train=True,
                            rng_key=None, token_tile=256, vocab_tile=512):
    """x: (B, S) int token ids; table: (V, D) -> (B, S, D).

    NOTE: out-of-range token ids produce an all-zero embedding row (one-hot
    matches nothing) instead of raising like torch.nn.Embedding.
    """
    B, S = x.shape
    V, D = table.shape
    T = B * S
    p = float(dropout_perc)

    apply_dropout = bool(train) and p > 0.0
    if apply_dropout and p >= 1.0:
        # nn.Dropout(1.0) zeroes everything; avoid the 1/(1-p) division.
        return jnp.zeros((B, S, D), dtype=table.dtype)

    # ---- tile sizes / padding (respect the (8,128) block constraint) -------
    token_tile = max(8, _round_up(int(token_tile), 8))
    vocab_tile = max(8, _round_up(int(vocab_tile), 8))
    tt = min(token_tile, _round_up(T, 8))
    T_pad = _round_up(T, tt)
    tk = min(vocab_tile, _round_up(V, 8))
    V_pad = _round_up(V, tk)

    ids = x.reshape(T).astype(jnp.int32)
    if T_pad != T:
        ids = jnp.pad(ids, (0, T_pad - T))
    ids = ids.reshape(T_pad, 1)

    tab = table
    if V_pad != V:
        tab = jnp.pad(tab, ((0, V_pad - V), (0, 0)))

    # ---- dropout randomness (generated outside the kernel, streamed in) ----
    inputs = [ids, tab]
    in_specs = [
        pl.BlockSpec((tt, 1), lambda i, k: (i, 0)),   # token-id tile
        pl.BlockSpec((tk, D), lambda i, k: (k, 0)),   # vocab (K) tile of the table
    ]
    keep_threshold = 0
    inv_keep = 1.0
    if apply_dropout:
        if rng_key is None:
            rng_key = jax.random.PRNGKey(0)
        bits = jax.random.bits(rng_key, (T_pad, D), dtype=jnp.uint32)
        keep_threshold = min(int(round(p * 2.0 ** 32)), 2 ** 32 - 1)
        inv_keep = 1.0 / (1.0 - p)
        inputs.append(bits)
        in_specs.append(pl.BlockSpec((tt, D), lambda i, k: (i, 0)))

    out_spec = pl.BlockSpec((tt, D), lambda i, k: (i, 0))

    # ---- VMEM budget: double-buffered I/O tiles + f32 accumulator ----------
    elt = jnp.dtype(table.dtype).itemsize
    per_step = (tt * 4 + tk * D * elt + tt * D * elt
                + (tt * D * 4 if apply_dropout else 0))
    vmem_limit = int(min(56 * 1024 * 1024,
                         max(32 * 1024 * 1024, 2 * (2 * per_step + tt * D * 4))))

    kernel = functools.partial(_embed_kernel,
                               has_dropout=apply_dropout,
                               keep_threshold=keep_threshold,
                               inv_keep=inv_keep)

    # TODO(synk): for d_model < 128 a lane-dense (128-multiple) out_spec slab
    # would avoid masked vst.msk partial stores; skipped for clarity here.
    out = pl.pallas_call(
        kernel,
        out_shape=jax.ShapeDtypeStruct((T_pad, D), table.dtype),
        grid_spec=pltpu.PrefetchScalarGridSpec(
            num_scalar_prefetch=0,
            grid=(T_pad // tt, V_pad // tk),
            in_specs=in_specs,
            out_specs=out_spec,
            scratch_shapes=[pltpu.VMEM((tt, D), jnp.float32)],
        ),
        compiler_params=pltpu.CompilerParams(
            dimension_semantics=("parallel", "arbitrary"),
            vmem_limit_bytes=vmem_limit),
    )(*inputs)

    return out[:T].reshape(B, S, D)


if __name__ == "__main__":
    vocab_size, d_model, dropout_perc = 64, 32, 0.1
    B, S = 2, 8

    key = jax.random.PRNGKey(0)
    k_tab, k_ids, k_drop = jax.random.split(key, 3)

    # Deterministic parameter init (nn.Embedding default: N(0, 1)).
    table = jax.random.normal(k_tab, (vocab_size, d_model), dtype=jnp.float32)
    x = jax.random.randint(k_ids, (B, S), 0, vocab_size, dtype=jnp.int32)

    # Training mode (dropout active).
    out = embedding_layer_forward(x, table, dropout_perc=dropout_perc,
                                  train=True, rng_key=k_drop)
    jax.block_until_ready(out)
    assert out.shape == (B, S, d_model)
    assert out.dtype == jnp.float32

    # Eval mode (dropout = identity) must exactly reproduce the gather.
    out_eval = embedding_layer_forward(x, table, dropout_perc=dropout_perc,
                                       train=False)
    jax.block_until_ready(out_eval)
    ref = table[x]
    assert jnp.allclose(out_eval, ref, atol=1e-5)

    # Training-mode sanity: every surviving element equals ref / (1 - p).
    mask = out != 0
    assert jnp.allclose(jnp.where(mask, out * (1.0 - dropout_perc), 0.0),
                        jnp.where(mask, ref, 0.0), atol=1e-5)

    print("KERNEL_OK")
</pallas_src>

<mosaic_0001>
module attributes {stable_mosaic.version = 11 : i64} {
  func.func @_embed_kernel(%arg0: i32, %arg1: i32, %arg2: memref<16x1xi32, #tpu.memory_space<vmem>>, %arg3: memref<64x32xf32, #tpu.memory_space<vmem>>, %arg4: memref<16x32xi32, #tpu.memory_space<vmem>>, %arg5: memref<16x32xf32, #tpu.memory_space<vmem>>, %arg6: memref<16x32xf32, #tpu.memory_space<vmem>>) attributes {dimension_semantics = [#tpu.dimension_semantics<parallel>, #tpu.dimension_semantics<arbitrary>], iteration_bounds = array<i64: 1, 1>, scalar_prefetch = 0 : i64, scratch_operands = 1 : i64, tpu.core_type = #tpu.core_type<tc>, window_params = [{transform_indices = @transform_0, window_bounds = array<i64: 16, 1>}, {transform_indices = @transform_1, window_bounds = array<i64: 64, 32>}, {transform_indices = @transform_2, window_bounds = array<i64: 16, 32>}, {transform_indices = @transform_3, window_bounds = array<i64: 16, 32>}]} {
    %c0_i32 = arith.constant 0 : i32
    %0 = arith.cmpi eq, %arg1, %c0_i32 : i32
    %1 = arith.extui %0 : i1 to i32
    %c0_i32_0 = arith.constant 0 : i32
    %2 = arith.cmpi ne, %1, %c0_i32_0 : i32
    scf.if %2 {
      %cst_10 = arith.constant 0.000000e+00 : f32
      %20 = vector.broadcast %cst_10 : f32 to vector<16x32xf32>
      %c0_11 = arith.constant 0 : index
      %c0_12 = arith.constant 0 : index
      %21 = vector.load %arg6[%c0_11, %c0_12] : memref<16x32xf32, #tpu.memory_space<vmem>>, vector<16x32xf32>
      tpu.vector_store %arg6[%c0_11, %c0_12], %20 {strides = array<i32>} : memref<16x32xf32, #tpu.memory_space<vmem>>, vector<16x32xf32>,
    } else {
    }
    %c0 = arith.constant 0 : index
    %c0_1 = arith.constant 0 : index
    %3 = vector.load %arg2[%c0, %c0_1] : memref<16x1xi32, #tpu.memory_space<vmem>>, vector<16x1xi32>
    %4 = tpu.iota {dimensions = array<i32: 1>} : vector<16x64xi32>
    %c64_i32 = arith.constant 64 : i32
    %5 = arith.muli %arg1, %c64_i32 : i32
    %6 = vector.broadcast %5 : i32 to vector<16x64xi32>
    %7 = arith.addi %4, %6 : vector<16x64xi32>
    %8 = vector.broadcast %3 : vector<16x1xi32> to vector<16x64xi32>
    %9 = arith.cmpi eq, %8, %7 : vector<16x64xi32>
    %10 = arith.extui %9 : vector<16x64xi1> to vector<16x64xi32>
    %11 = arith.sitofp %10 : vector<16x64xi32> to vector<16x64xf32>
    %c0_2 = arith.constant 0 : index
    %c0_3 = arith.constant 0 : index
    %12 = vector.load %arg6[%c0_2, %c0_3] : memref<16x32xf32, #tpu.memory_space<vmem>>, vector<16x32xf32>
    %c0_4 = arith.constant 0 : index
    %c0_5 = arith.constant 0 : index
    %13 = vector.load %arg3[%c0_4, %c0_5] : memref<64x32xf32, #tpu.memory_space<vmem>>, vector<64x32xf32>
    %cst = arith.constant dense<0.000000e+00> : vector<16x32xf32>
    %14 = tpu.matmul %11, %13, %cst {dimension_numbers = #tpu.dot_dimension_numbers<[1], [0], [0], [1], [0, 0, 1, 1], [], []>} : vector<16x64xf32>, vector<64x32xf32>, vector<16x32xf32> -> vector<16x32xf32>
    %15 = arith.addf %12, %14 : vector<16x32xf32>
    %c0_6 = arith.constant 0 : index
    %c0_7 = arith.constant 0 : index
    %16 = vector.load %arg6[%c0_6, %c0_7] : memref<16x32xf32, #tpu.memory_space<vmem>>, vector<16x32xf32>
    tpu.vector_store %arg6[%c0_6, %c0_7], %15 {strides = array<i32>} : memref<16x32xf32, #tpu.memory_space<vmem>>, vector<16x32xf32>,
    %c0_i32_8 = arith.constant 0 : i32
    %17 = arith.cmpi eq, %arg1, %c0_i32_8 : i32
    %18 = arith.extui %17 : i1 to i32
    %c0_i32_9 = arith.constant 0 : i32
    %19 = arith.cmpi ne, %18, %c0_i32_9 : i32
    scf.if %19 {
      %c0_10 = arith.constant 0 : index
      %c0_11 = arith.constant 0 : index
      %20 = vector.load %arg6[%c0_10, %c0_11] : memref<16x32xf32, #tpu.memory_space<vmem>>, vector<16x32xf32>
      %c0_12 = arith.constant 0 : index
      %c0_13 = arith.constant 0 : index
      %21 = vector.load %arg4[%c0_12, %c0_13] : memref<16x32xi32, #tpu.memory_space<vmem>>, vector<16x32xi32>
      %c429496730_i32 = arith.constant 429496730 : i32
      %22 = vector.broadcast %c429496730_i32 : i32 to vector<16x32xi32>
      %23 = arith.cmpi uge, %21, %22 : vector<16x32xi32>
      %cst_14 = arith.constant 1.11111116 : f32
      %cst_15 = arith.constant 0.000000e+00 : f32
      %24 = vector.broadcast %cst_14 : f32 to vector<16x32xf32>
      %25 = vector.broadcast %cst_15 : f32 to vector<16x32xf32>
      %26 = arith.select %23, %24, %25 : vector<16x32xi1>, vector<16x32xf32>
      %27 = arith.mulf %20, %26 : vector<16x32xf32>
      %c0_16 = arith.constant 0 : index
      %c0_17 = arith.constant 0 : index
      %28 = vector.load %arg5[%c0_16, %c0_17] : memref<16x32xf32, #tpu.memory_space<vmem>>, vector<16x32xf32>
      tpu.vector_store %arg5[%c0_16, %c0_17], %27 {strides = array<i32>} : memref<16x32xf32, #tpu.memory_space<vmem>>, vector<16x32xf32>,
    } else {
    }
    return
  }
  func.func @transform_0(%arg0: i32, %arg1: i32) -> (i32, i32) {
    %c0_i32 = arith.constant 0 : i32
    %c0_i32_0 = arith.constant 0 : i32
    return %arg0, %c0_i32 : i32, i32
  }
  func.func @transform_1(%arg0: i32, %arg1: i32) -> (i32, i32) {
    %c0_i32 = arith.constant 0 : i32
    %c0_i32_0 = arith.constant 0 : i32
    return %arg1, %c0_i32 : i32, i32
  }
  func.func @transform_2(%arg0: i32, %arg1: i32) -> (i32, i32) {
    %c0_i32 = arith.constant 0 : i32
    %c0_i32_0 = arith.constant 0 : i32
    return %arg0, %c0_i32 : i32, i32
  }
  func.func @transform_3(%arg0: i32, %arg1: i32) -> (i32, i32) {
    %c0_i32 = arith.constant 0 : i32
    %c0_i32_0 = arith.constant 0 : i32
    return %arg0, %c0_i32 : i32, i32
  }
}

</mosaic_0001>

<llo_original>
// kernel: tpu_custom_call.1
$region0: #{tpu_custom_call.1}
  #allocation0 [shape = 'u32[]', space=smem, size = 0x4, offset = 0x4, fixed_abs, tag = 'smem constant byte address 0x4 - core index']
  #allocation1 [shape = 'u32[144,128]{1,0:T(1,128)}', space=vmem, size = 0x12000, scoped, tag = 'internal scratch']
  #allocation2 [shape = 'f32[16,32]{1,0:T(8,128)}', space=vmem, size = 0x2000, scoped, tag = 'scratch operand']
  %s0 = inlined_call_operand.vmem [shape: s32[16,1], index: 0, kind: input, shape index: {}]
  %s1 = inlined_call_operand.vmem [shape: f32[64,32], index: 1, kind: input, shape index: {}]
  %s2 = inlined_call_operand.vmem [shape: u32[16,32], index: 2, kind: input, shape index: {}]
  %s3 = inlined_call_operand.hbm [shape: f32[16,32], index: 3, kind: output, shape index: {}]
  %s4 = sld [smem:[#allocation0]]
  $region30: #{tpu_custom_call.1} parent=0
    _
  %s6 = ssub.s32 1, %s4
  %s7 = scalar_select 0, %s6, %s4
  $region1: #{tpu_custom_call.1} parent=0
    #allocation3 [shape = 'u8[8192]{0}', space=vmem, size = 0x2000, scoped, tag = 'output window, operand 0, single buffered']
    #allocation4 [shape = 's32[1]{0}', space=sflag, size = 0x4, scoped, tag = 'scoped memory for tpu_custom_call.1']
    %8 = vsyncpa [#allocation4], 0
    // Predicated region
    $region2: #{tpu_custom_call.1} parent=1 // pred_check
      _
    $region3: #{tpu_custom_call.1} parent=1 // pred_check_branch
      %10 = sbr.rel (0) target = $region5
    $region4: #{tpu_custom_call.1} parent=1 // pred_region
      _
    $region5: #{tpu_custom_call.1} parent=1 // pred_fallthru
      _
    // Predicated region
    $region6: #{tpu_custom_call.1} parent=1 // pred_check
      _
    $region7: #{tpu_custom_call.1} parent=1 // pred_check_branch
      %12 = sbr.rel (0) target = $region9
    $region8: #{tpu_custom_call.1} parent=1 // pred_region
      _
    $region9: #{tpu_custom_call.1} parent=1 // pred_fallthru
      _
    // Predicated region
    $region10: #{tpu_custom_call.1} parent=1 // pred_check
      _
    $region11: #{tpu_custom_call.1} parent=1 // pred_check_branch
      %14 = sbr.rel (0) target = $region13
    $region12: #{tpu_custom_call.1} parent=1 // pred_region
      _
    $region13: #{tpu_custom_call.1} parent=1 // pred_fallthru
      _
    %p15 = scmp.eq.s32.totalorder 0, 0
    // Predicated region
    $region14: #{tpu_custom_call.1} parent=1 // pred_check
      %p16 = pneg %p15
    $region15: #{tpu_custom_call.1} parent=1 // pred_check_branch
      %18 = sbr.rel (%p16) target = $region17
    $region16: #{tpu_custom_call.1} parent=1 // pred_region
      %vm19 = vcmask 261120
      %20 = vst.msk [vmem:[#allocation2] sm:$0xff] %vm19, 0.0
      %21 = vst.msk [vmem:[#allocation2 + $0x8] sm:$0xff] %vm19, 0.0
    $region17: #{tpu_custom_call.1} parent=1 // pred_fallthru
      _
    %v22 = vld [vmem:[%s0] sm:$0xff]
    %v23 = vld [vmem:[%s0 + $0x8] sm:$0xff]
    %v24 = vlaneseq
    %v25 = vand.u32 %v24, 127
    %s26 = smul.u32 0, 64
    %v27 = vstv %s26
    %v28 = vadd.s32 %v25, %v27
    %29 = vset.pattern.permute.xlu0 0
    %30 = vperm.xlu0 %29, %v22
    %v31 = vpop.permute.xlu0 %30
    %32 = vset.pattern.permute.xlu0 0
    %33 = vperm.xlu0 %32, %v23
    %v34 = vpop.permute.xlu0 %33
    %vm35 = vcmp.eq.s32.totalorder %v31, %v28
    %vm36 = vcmp.eq.s32.totalorder %v34, %v28
    %v37 = vsel %vm35, 1, 0
    %v38 = vsel %vm36, 1, 0
    %v39 = vcvt.s32.f32 %v37
    %v40 = vcvt.s32.f32 %v38
    %v41 = vld [vmem:[#allocation2] sm:$0xff]
    %v42 = vld [vmem:[#allocation2 + $0x8] sm:$0xff]
    %v43 = vld [vmem:[%s1] sm:$0xff]
    %v44 = vld [vmem:[%s1 + $0x8] sm:$0xff]
    %v45 = vld [vmem:[%s1 + $0x10] sm:$0xff]
    %v46 = vld [vmem:[%s1 + $0x18] sm:$0xff]
    %v47 = vld [vmem:[%s1 + $0x20] sm:$0xff]
    %v48 = vld [vmem:[%s1 + $0x28] sm:$0xff]
    %v49 = vld [vmem:[%s1 + $0x30] sm:$0xff]
    %v50 = vld [vmem:[%s1 + $0x38] sm:$0xff]
    %vm51 = vcmask 523264
    %v53 = vsel %vm51, %v39, 0
    %v56 = vsel %vm51, %v40, 0
    %58 = vmatprep.subr.mxu0 0.0
    %59 = vmatpush1.msra.mxu0 %v43
    %60 = vmatprep.subr.mxu0 0.0
    %61 = vmatpush1.msra.mxu0 %v44
    %62 = vmatprep.subr.mxu0 0.0
    %63 = vmatpush1.msra.mxu0 %v45
    %64 = vmatprep.subr.mxu0 0.0
    %65 = vmatpush1.msra.mxu0 %v46
    %66 = vmatprep.subr.mxu0 0.0
    %67 = vmatpush1.msra.mxu0 %v47
    %68 = vmatprep.subr.mxu0 0.0
    %69 = vmatpush1.msra.mxu0 %v48
    %70 = vmatprep.subr.mxu0 0.0
    %71 = vmatpush1.msra.mxu0 %v49
    %72 = vmatprep.subr.mxu0 0.0
    %73 = vmatpush1.msra.mxu0 %v50
    %74 = vmatprep.subr.mxu0 0.0
    %75 = vmatpush1.msra.mxu0 0.0
    %76 = vmatprep.subr.mxu0 0.0
    %77 = vmatpush1.msra.mxu0 0.0
    %78 = vmatprep.subr.mxu0 0.0
    %79 = vmatpush1.msra.mxu0 0.0
    %80 = vmatprep.subr.mxu0 0.0
    %81 = vmatpush1.msra.mxu0 0.0
    %82 = vmatprep.subr.mxu0 0.0
    %83 = vmatpush1.msra.mxu0 0.0
    %84 = vmatprep.subr.mxu0 0.0
    %85 = vmatpush1.msra.mxu0 0.0
    %86 = vmatprep.subr.mxu0 0.0
    %87 = vmatpush1.msra.mxu0 0.0
    %88 = vmatprep.subr.mxu0 0.0
    %89 = vmatpush1.msra.mxu0 0.0
    %90 = vmatprep.subr.mxu0 0.0
    %91 = vmatpush1.msra.mxu0 0.0
    %92 = vmatprep.subr.mxu0 0.0
    %93 = vmatpush1.msra.mxu0 0.0
    %94 = vmatprep.subr.mxu0 0.0
    %95 = vmatpush1.msra.mxu0 0.0
    %96 = vmatprep.subr.mxu0 0.0
    %97 = vmatpush1.msra.mxu0 0.0
    %98 = vmatprep.subr.mxu0 0.0
    %99 = vmatpush1.msra.mxu0 0.0
    %100 = vmatprep.subr.mxu0 0.0
    %101 = vmatpush1.msra.mxu0 0.0
    %102 = vmatprep.subr.mxu0 0.0
    %103 = vmatpush1.msra.mxu0 0.0
    %104 = vmatprep.subr.mxu0 0.0
    %105 = vmatpush1.msra.mxu0 0.0
    %106 = vmatprep.subr.mxu0 0.0
    %107 = vmatpush1.msra.mxu0 0.0
    %108 = vmatprep.subr.mxu0 0.0
    %109 = vmatpush1.msra.mxu0 0.0
    %110 = vmatprep.subr.mxu0 0.0
    %111 = vmatpush1.msra.mxu0 0.0
    %112 = vmatprep.subr.mxu0 0.0
    %113 = vmatpush1.msra.mxu0 0.0
    %114 = vmatprep.subr.mxu0 0.0
    %115 = vmatpush1.msra.mxu0 0.0
    %116 = vmatprep.subr.mxu0 0.0
    %117 = vmatpush1.msra.mxu0 0.0
    %118 = vmatprep.subr.mxu0 0.0
    %119 = vmatpush1.msra.mxu0 0.0
    %120 = vmatprep.subr.mxu0 0.0
    %121 = vmatpush1.msra.mxu0 0.0
    %122 = vmatprep.mubr.f32.mxu0 0.0
    %123 = vmatmul.mubr.f32.gmra.mrb[0].mxu0 %v53
    %v124 = vpop.f32.mrb[0].mxu0
    %v125 = vadd.f32 0.0, %v124
    %v126 = vpop.f32.mrb[0].mxu0
    %127 = vmatprep.mubr.f32.mxu0 0.0
    %128 = vmatmul.mubr.f32.gmra.mrb[0].mxu0 %v56
    %v129 = vpop.f32.mrb[0].mxu0
    %v130 = vadd.f32 0.0, %v129
    %v131 = vpop.f32.mrb[0].mxu0
    %132 = vdwg.mxu0
    %v133 = vadd.f32 %v41, %v125
    %v134 = vadd.f32 %v42, %v130
    %vm135 = vcmask 261120
    %136 = vst.msk [vmem:[#allocation2] sm:$0xff] %vm135, %v133
    %137 = vst.msk [vmem:[#allocation2 + $0x8] sm:$0xff] %vm135, %v134
    // Predicated region
    $region18: #{tpu_custom_call.1} parent=1 // pred_check
      %p138 = pneg %p15
    $region19: #{tpu_custom_call.1} parent=1 // pred_check_branch
      %140 = sbr.rel (%p138) target = $region21
    $region20: #{tpu_custom_call.1} parent=1 // pred_region
      %v141 = vld [vmem:[#allocation2] sm:$0xff]
      %v142 = vld [vmem:[#allocation2 + $0x8] sm:$0xff]
      %v143 = vld [vmem:[%s2] sm:$0xff]
      %v144 = vld [vmem:[%s2 + $0x8] sm:$0xff]
      %vm145 = vcmp.ge.u32.totalorder %v143, 429496730
      %vm146 = vcmp.ge.u32.totalorder %v144, 429496730
      %v147 = vsel %vm145, 1.1111112, 0.0
      %v148 = vsel %vm146, 1.1111112, 0.0
      %v149 = vmul.f32 %v141, %v147
      %v150 = vmul.f32 %v142, %v148
      %151 = vst.msk [vmem:[#allocation3] sm:$0xff] %vm135, %v149
      %152 = vst.msk [vmem:[#allocation3 + $0x8] sm:$0xff] %vm135, %v150
    $region21: #{tpu_custom_call.1} parent=1 // pred_fallthru
      _
    // Predicated region
    $region22: #{tpu_custom_call.1} parent=1 // pred_check
      _
    $region23: #{tpu_custom_call.1} parent=1 // pred_check_branch
      %154 = sbr.rel (0) target = $region25
    $region24: #{tpu_custom_call.1} parent=1 // pred_region
      %s156 = ssub.s32 256, 256
      %157 = vsyncadd [#allocation4], %s156
      %s158 = sshll.u32 [#allocation3], 4
      %s159 = int_to_ptr.vmem [resolvable:$true] %s158
      %164 = dma.vmem_to_hbm [thread:$0]  %s159, 256, %s3, [#allocation4], 128, 128, 8
    $region25: #{tpu_custom_call.1} parent=1 // pred_fallthru
      _
    // Predicated region
    $region26: #{tpu_custom_call.1} parent=1 // pred_check
      _
    $region27: #{tpu_custom_call.1} parent=1 // pred_check_branch
      %166 = sbr.rel (0) target = $region29
    $region28: #{tpu_custom_call.1} parent=1 // pred_region
      %167 = dma.done [#allocation4], 256
    $region29: #{tpu_custom_call.1} parent=1 // pred_fallthru
      _
    %168 = vsyncpa [#allocation4], 1

</llo_original>
